<compile_context>
chip_gen: v7x
topology: tpu7x:2x2x1
jax: 0.10.0
libtpu: 0.0.40
codegen_flags: <defaults>
</compile_context>

<pallas_src>
import math

import jax
import jax.numpy as jnp
from jax.experimental import pallas as pl
from jax.experimental.pallas import tpu as pltpu


def _round_up(x, m):
    return ((x + m - 1) // m) * m


def _graph_conv_kernel(scal_ref, adj_ref, x_ref, h0_ref, w_ref, out_ref, acc_ref):
    k = pl.program_id(1)

    @pl.when(k == 0)
    def _():
        acc_ref[...] = jnp.zeros_like(acc_ref)

    # Partial sum of hi = adj @ x for this (row-tile, k-tile).
    acc_ref[...] += jnp.dot(adj_ref[...], x_ref[...],
                            preferred_element_type=jnp.float32)

    @pl.when(k == pl.num_programs(1) - 1)
    def _():
        alpha = scal_ref[0]
        theta = scal_ref[1]
        hi = acc_ref[...]
        support = (1.0 - alpha) * hi + alpha * h0_ref[...].astype(jnp.float32)
        out = theta * jnp.dot(support, w_ref[...],
                              preferred_element_type=jnp.float32)
        out = out + (1.0 - theta) * support
        out_ref[...] = out.astype(out_ref.dtype)


def graph_convolution(x, adj, h0, weight, alpha_param,
                      *, lamda=0.5, l=1, residual=False, tm=256, tk=512):
    """Forward pass of GraphConvolution (variant=False) as a fused Pallas kernel."""
    n, f_in = x.shape
    f_in_w, f_out = weight.shape
    assert f_in_w == f_in, "weight rows must match input features"
    assert adj.shape == (n, n)
    assert h0.shape == (n, f_in)
    # Non-variant path adds (support @ W) [N, f_out] to support [N, f_in]:
    assert f_in == f_out, "non-variant GraphConvolution requires in_features == out_features"

    del lamda, l  # theta = log(lamda/l + 1) is immediately overwritten by the module
    theta = 0.25
    alpha = jax.nn.sigmoid(jnp.asarray(alpha_param, jnp.float32).reshape(-1)[0]) * 0.5
    scalars = jnp.stack([alpha, jnp.float32(theta)]).astype(jnp.float32)

    # Lane-dense, divisible padding:
    #   feature dim  -> multiple of 128 (MXU / lane alignment)
    #   node rows    -> multiple of tm
    #   node k-dim   -> multiple of tk   (asymmetric: avoids lcm(tm, tk) blow-up)
    fp = _round_up(f_in, 128)
    n128 = _round_up(n, 128)
    tm = min(tm, n128)
    tk = min(tk, n128)
    n_rows = _round_up(n, tm)
    n_k = _round_up(n, tk)

    def pad2(a, rows, cols):
        pr, pc = rows - a.shape[0], cols - a.shape[1]
        return a if (pr == 0 and pc == 0) else jnp.pad(a, ((0, pr), (0, pc)))

    x_p = pad2(x.astype(jnp.float32), n_k, fp)          # [n_k, fp]
    adj_p = pad2(adj.astype(jnp.float32), n_rows, n_k)  # [n_rows, n_k]
    h0_p = pad2(h0.astype(jnp.float32), n_rows, fp)     # [n_rows, fp]
    w_p = pad2(weight.astype(jnp.float32), fp, fp)      # [fp, fp]

    grid = (n_rows // tm, n_k // tk)

    flops = 2 * n_rows * n_k * fp + 2 * n_rows * fp * fp
    bytes_accessed = 4 * (n_rows * n_k + n_k * fp + 2 * n_rows * fp + fp * fp)

    out_p = pl.pallas_call(
        _graph_conv_kernel,
        out_shape=jax.ShapeDtypeStruct((n_rows, fp), jnp.float32),
        grid=grid,
        in_specs=[
            pl.BlockSpec(memory_space=pltpu.MemorySpace.SMEM),  # [alpha, theta]
            pl.BlockSpec((tm, tk), lambda i, k: (i, k)),        # adj tile
            pl.BlockSpec((tk, fp), lambda i, k: (k, 0)),        # x k-slab
            pl.BlockSpec((tm, fp), lambda i, k: (i, 0)),        # h0 row tile
            pl.BlockSpec((fp, fp), lambda i, k: (0, 0)),        # weight (resident)
        ],
        out_specs=pl.BlockSpec((tm, fp), lambda i, k: (i, 0)),
        scratch_shapes=[pltpu.VMEM((tm, fp), jnp.float32)],
        compiler_params=pltpu.CompilerParams(
            dimension_semantics=("parallel", "arbitrary"),
        ),
        cost_estimate=pl.CostEstimate(
            flops=flops, transcendentals=0, bytes_accessed=bytes_accessed),
    )(scalars, adj_p, x_p, h0_p, w_p)

    out = out_p[:n, :f_out]
    if residual:
        out = out + x
    # TODO(synk): variant=True path (support = concat([hi, h0], 1) with a
    # 2*in_features weight) is not implemented in the kernel.
    return out


def reference(x, adj, h0, weight, alpha_param, theta=0.25, residual=False):
    alpha = jax.nn.sigmoid(alpha_param.reshape(-1)[0]) * 0.5
    hi = adj @ x
    support = (1.0 - alpha) * hi + alpha * h0
    out = theta * (support @ weight) + (1.0 - theta) * support
    if residual:
        out = out + x
    return out


if __name__ == "__main__":
    N = 200          # nodes (rows padded to 256 inside the wrapper)
    F = 32           # in_features == out_features (GCNII hidden width)

    key = jax.random.PRNGKey(0)
    k_x, k_adj, k_h0, k_w = jax.random.split(key, 4)

    x = jax.random.normal(k_x, (N, F), dtype=jnp.float32)
    h0 = jax.random.normal(k_h0, (N, F), dtype=jnp.float32)

    # Dense adjacency with self loops, row-normalized (torch.spmm treated dense).
    adj = (jax.random.uniform(k_adj, (N, N)) > 0.9).astype(jnp.float32)
    adj = adj + jnp.eye(N, dtype=jnp.float32)
    adj = adj / jnp.sum(adj, axis=1, keepdims=True)

    # reset_parameters(): weight ~ U(-stdv, stdv), stdv = 1/sqrt(out_features); alpha = 0.4
    stdv = 1.0 / math.sqrt(F)
    weight = jax.random.uniform(k_w, (F, F), minval=-stdv, maxval=stdv,
                                dtype=jnp.float32)
    alpha_param = jnp.full((1,), 0.4, dtype=jnp.float32)

    # Small tiles here so the demo exercises a real 2x2 (row, k) grid with the
    # accumulator path; defaults (tm=256, tk=512) are for realistic graph sizes.
    out = graph_convolution(x, adj, h0, weight, alpha_param,
                            lamda=0.5, l=1, tm=128, tk=128)
    out = jax.block_until_ready(out)

    ref = reference(x, adj, h0, weight, alpha_param)
    assert out.shape == (N, F)
    max_err = float(jnp.max(jnp.abs(out - ref)))
    assert jnp.allclose(out, ref, atol=1e-4, rtol=1e-4), (
        f"mismatch vs reference, max abs err {max_err}")

    print("KERNEL_OK")
</pallas_src>

<mosaic_0001>
module attributes {stable_mosaic.version = 11 : i64} {
  func.func @_graph_conv_kernel(%arg0: i32, %arg1: i32, %arg2: memref<2xf32, #tpu.memory_space<smem>>, %arg3: memref<128x128xf32, #tpu.memory_space<vmem>>, %arg4: memref<128x128xf32, #tpu.memory_space<vmem>>, %arg5: memref<128x128xf32, #tpu.memory_space<vmem>>, %arg6: memref<128x128xf32, #tpu.memory_space<vmem>>, %arg7: memref<128x128xf32, #tpu.memory_space<vmem>>, %arg8: memref<128x128xf32, #tpu.memory_space<vmem>>) attributes {dimension_semantics = [#tpu.dimension_semantics<parallel>, #tpu.dimension_semantics<arbitrary>], iteration_bounds = array<i64: 2, 2>, scalar_prefetch = 0 : i64, scratch_operands = 1 : i64, tpu.core_type = #tpu.core_type<tc>, window_params = [{transform_indices = @transform_0, window_bounds = array<i64: 2>}, {transform_indices = @transform_1, window_bounds = array<i64: 128, 128>}, {transform_indices = @transform_2, window_bounds = array<i64: 128, 128>}, {transform_indices = @transform_3, window_bounds = array<i64: 128, 128>}, {pipeline_mode = #tpu.pipeline_mode<synchronous>, transform_indices = @transform_4, window_bounds = array<i64: 128, 128>}, {transform_indices = @transform_5, window_bounds = array<i64: 128, 128>}]} {
    %c0_i32 = arith.constant 0 : i32
    %0 = arith.cmpi eq, %arg1, %c0_i32 : i32
    %1 = arith.extui %0 : i1 to i32
    %c0_i32_0 = arith.constant 0 : i32
    %2 = arith.cmpi ne, %1, %c0_i32_0 : i32
    scf.if %2 {
      %cst_9 = arith.constant 0.000000e+00 : f32
      %12 = vector.broadcast %cst_9 : f32 to vector<128x128xf32>
      %c0_10 = arith.constant 0 : index
      %c0_11 = arith.constant 0 : index
      %13 = vector.load %arg8[%c0_10, %c0_11] : memref<128x128xf32, #tpu.memory_space<vmem>>, vector<128x128xf32>
      tpu.vector_store %arg8[%c0_10, %c0_11], %12 {strides = array<i32>} : memref<128x128xf32, #tpu.memory_space<vmem>>, vector<128x128xf32>,
    } else {
    }
    %c0 = arith.constant 0 : index
    %c0_1 = arith.constant 0 : index
    %3 = vector.load %arg8[%c0, %c0_1] : memref<128x128xf32, #tpu.memory_space<vmem>>, vector<128x128xf32>
    %c0_2 = arith.constant 0 : index
    %c0_3 = arith.constant 0 : index
    %4 = vector.load %arg3[%c0_2, %c0_3] : memref<128x128xf32, #tpu.memory_space<vmem>>, vector<128x128xf32>
    %c0_4 = arith.constant 0 : index
    %c0_5 = arith.constant 0 : index
    %5 = vector.load %arg4[%c0_4, %c0_5] : memref<128x128xf32, #tpu.memory_space<vmem>>, vector<128x128xf32>
    %cst = arith.constant dense<0.000000e+00> : vector<128x128xf32>
    %6 = tpu.matmul %4, %5, %cst {dimension_numbers = #tpu.dot_dimension_numbers<[1], [0], [0], [1], [0, 0, 1, 1], [], []>} : vector<128x128xf32>, vector<128x128xf32>, vector<128x128xf32> -> vector<128x128xf32>
    %7 = arith.addf %3, %6 : vector<128x128xf32>
    %c0_6 = arith.constant 0 : index
    %c0_7 = arith.constant 0 : index
    %8 = vector.load %arg8[%c0_6, %c0_7] : memref<128x128xf32, #tpu.memory_space<vmem>>, vector<128x128xf32>
    tpu.vector_store %arg8[%c0_6, %c0_7], %7 {strides = array<i32>} : memref<128x128xf32, #tpu.memory_space<vmem>>, vector<128x128xf32>,
    %c1_i32 = arith.constant 1 : i32
    %9 = arith.cmpi eq, %arg1, %c1_i32 : i32
    %10 = arith.extui %9 : i1 to i32
    %c0_i32_8 = arith.constant 0 : i32
    %11 = arith.cmpi ne, %10, %c0_i32_8 : i32
    scf.if %11 {
      %c0_9 = arith.constant 0 : index
      %12 = memref.load %arg2[%c0_9] : memref<2xf32, #tpu.memory_space<smem>>
      %c1 = arith.constant 1 : index
      %13 = memref.load %arg2[%c1] : memref<2xf32, #tpu.memory_space<smem>>
      %c0_10 = arith.constant 0 : index
      %c0_11 = arith.constant 0 : index
      %14 = vector.load %arg8[%c0_10, %c0_11] : memref<128x128xf32, #tpu.memory_space<vmem>>, vector<128x128xf32>
      %cst_12 = arith.constant 1.000000e+00 : f32
      %15 = arith.subf %cst_12, %12 : f32
      %16 = vector.broadcast %15 : f32 to vector<128x128xf32>
      %17 = arith.mulf %16, %14 : vector<128x128xf32>
      %c0_13 = arith.constant 0 : index
      %c0_14 = arith.constant 0 : index
      %18 = vector.load %arg5[%c0_13, %c0_14] : memref<128x128xf32, #tpu.memory_space<vmem>>, vector<128x128xf32>
      %19 = vector.broadcast %12 : f32 to vector<128x128xf32>
      %20 = arith.mulf %19, %18 : vector<128x128xf32>
      %21 = arith.addf %17, %20 : vector<128x128xf32>
      %c0_15 = arith.constant 0 : index
      %c0_16 = arith.constant 0 : index
      %22 = vector.load %arg6[%c0_15, %c0_16] : memref<128x128xf32, #tpu.memory_space<vmem>>, vector<128x128xf32>
      %cst_17 = arith.constant dense<0.000000e+00> : vector<128x128xf32>
      %23 = tpu.matmul %21, %22, %cst_17 {dimension_numbers = #tpu.dot_dimension_numbers<[1], [0], [0], [1], [0, 0, 1, 1], [], []>} : vector<128x128xf32>, vector<128x128xf32>, vector<128x128xf32> -> vector<128x128xf32>
      %24 = vector.broadcast %13 : f32 to vector<128x128xf32>
      %25 = arith.mulf %24, %23 : vector<128x128xf32>
      %cst_18 = arith.constant 1.000000e+00 : f32
      %26 = arith.subf %cst_18, %13 : f32
      %27 = vector.broadcast %26 : f32 to vector<128x128xf32>
      %28 = arith.mulf %27, %21 : vector<128x128xf32>
      %29 = arith.addf %25, %28 : vector<128x128xf32>
      %c0_19 = arith.constant 0 : index
      %c0_20 = arith.constant 0 : index
      %30 = vector.load %arg7[%c0_19, %c0_20] : memref<128x128xf32, #tpu.memory_space<vmem>>, vector<128x128xf32>
      tpu.vector_store %arg7[%c0_19, %c0_20], %29 {strides = array<i32>} : memref<128x128xf32, #tpu.memory_space<vmem>>, vector<128x128xf32>,
    } else {
    }
    return
  }
  func.func @transform_0(%arg0: i32, %arg1: i32) -> i32 {
    %c0_i32 = arith.constant 0 : i32
    %c0_i32_0 = arith.constant 0 : i32
    return %c0_i32 : i32
  }
  func.func @transform_1(%arg0: i32, %arg1: i32) -> (i32, i32) {
    %c0_i32 = arith.constant 0 : i32
    return %arg0, %arg1 : i32, i32
  }
  func.func @transform_2(%arg0: i32, %arg1: i32) -> (i32, i32) {
    %c0_i32 = arith.constant 0 : i32
    %c0_i32_0 = arith.constant 0 : i32
    return %arg1, %c0_i32 : i32, i32
  }
  func.func @transform_3(%arg0: i32, %arg1: i32) -> (i32, i32) {
    %c0_i32 = arith.constant 0 : i32
    %c0_i32_0 = arith.constant 0 : i32
    return %arg0, %c0_i32 : i32, i32
  }
  func.func @transform_4(%arg0: i32, %arg1: i32) -> (i32, i32) {
    %c0_i32 = arith.constant 0 : i32
    %c0_i32_0 = arith.constant 0 : i32
    %c0_i32_1 = arith.constant 0 : i32
    return %c0_i32, %c0_i32_0 : i32, i32
  }
  func.func @transform_5(%arg0: i32, %arg1: i32) -> (i32, i32) {
    %c0_i32 = arith.constant 0 : i32
    %c0_i32_0 = arith.constant 0 : i32
    return %arg0, %c0_i32 : i32, i32
  }
}

</mosaic_0001>

<llo_original>
// kernel: tpu_custom_call.1
$region0: #{tpu_custom_call.1}
  #allocation0 [shape = 'u32[]', space=smem, size = 0x4, offset = 0x4, fixed_abs, tag = 'smem constant byte address 0x4 - core index']
  #allocation1 [shape = 'u32[144,128]{1,0:T(1,128)}', space=vmem, size = 0x12000, scoped, tag = 'internal scratch']
  #allocation2 [shape = 'f32[128,128]{1,0:T(8,128)}', space=vmem, size = 0x10000, scoped, tag = 'scratch operand']
  %s0 = inlined_call_operand.hbm [shape: f32[2], index: 0, kind: input, shape index: {}]
  %s1 = inlined_call_operand.hbm [shape: f32[256,256], index: 1, kind: input, shape index: {}]
  %s2 = inlined_call_operand.hbm [shape: f32[256,128], index: 2, kind: input, shape index: {}]
  %s3 = inlined_call_operand.hbm [shape: f32[256,128], index: 3, kind: input, shape index: {}]
  %s4 = inlined_call_operand.hbm [shape: f32[128,128], index: 4, kind: input, shape index: {}]
  %s5 = inlined_call_operand.hbm [shape: f32[256,128], index: 5, kind: output, shape index: {}]
  %s6 = sld [smem:[#allocation0]]
  $region81: #{tpu_custom_call.1} parent=0
    _
  %s8 = ssub.s32 1, %s6
  %s9 = scalar_select 0, %s8, %s6
  $region1: #{tpu_custom_call.1} parent=0
    #allocation3 [shape = 'u8[512]{0}', space=smem, size = 0x200, scoped, tag = 'input window, operand 0, single buffered']
    #allocation4 [shape = 's32[2]{0}', space=sflag, size = 0x8, scoped, tag = 'scoped memory for tpu_custom_call.1']
    #allocation5 [shape = 's32[2]{0}', space=sflag, size = 0x8, scoped, tag = 'scoped memory for tpu_custom_call.1']
    #allocation6 [shape = 's32[2]{0}', space=sflag, size = 0x8, scoped, tag = 'scoped memory for tpu_custom_call.1']
    #allocation7 [shape = 'u8[131072]{0}', space=vmem, size = 0x20000, scoped, tag = 'input window, operand 1']
    #allocation8 [shape = 'u8[131072]{0}', space=vmem, size = 0x20000, scoped, tag = 'input window, operand 2']
    #allocation9 [shape = 's32[2]{0}', space=sflag, size = 0x8, scoped, tag = 'scoped memory for tpu_custom_call.1']
    #allocation10 [shape = 'u8[131072]{0}', space=vmem, size = 0x20000, scoped, tag = 'input window, operand 3']
    #allocation11 [shape = 'u8[65536]{0}', space=vmem, size = 0x10000, scoped, tag = 'input window, operand 4, single buffered']
    #allocation12 [shape = 's32[1]{0}', space=sflag, size = 0x4, scoped, tag = 'scoped memory for tpu_custom_call.1']
    #allocation13 [shape = 'u8[131072]{0}', space=vmem, size = 0x20000, scoped, tag = 'output window, operand 0']
    %10 = vsyncpa [#allocation6], 0
    %11 = vsyncpa [#allocation4], 0
    %s12 = scalar_lea.sflag [#allocation4], 1
    %13 = vsyncpa %s12, 0
    %14 = vsyncpa [#allocation9], 0
    %s15 = scalar_lea.sflag [#allocation9], 1
    %16 = vsyncpa %s15, 0
    %17 = vsyncpa [#allocation12], 0
    %18 = vsyncpa [#allocation5], 0
    %s19 = scalar_lea.sflag [#allocation5], 1
    %20 = vsyncpa %s19, 0
    loop: start=0, step=1, limit=6
    $region2: #{tpu_custom_call.1} parent=1 // loop_pre_header
      _
    $region3: #{tpu_custom_call.1} parent=1 // loop_header
      %s22 = sphi 0, %s26
      %p23 = scmp.ge.s32.totalorder %s22, 6
      %s29 = sphi 0, %s41
      %s30 = sphi 0, %s37
      %s31 = sphi 0, %s29
      %s32 = sphi 0, %s30
      %s33 = sphi 0, %s31
      %s34 = sphi 0, %s32
      %s42 = sphi 0, %s42
      %s44 = sphi 0, %s42
      %s45 = sphi 0, %s44
      %s59 = sphi 0, %s45
      %s67 = sphi 0, %s69
      %s70 = sphi 0, %s67
      %s71 = sphi 0, %s70
      %s87 = sphi 0, %s71
      %s93 = sphi 0, %s95
      %s96 = sphi 0, %s93
      %s97 = sphi 0, %s96
      %s113 = sphi 0, %s97
      %s119 = sphi 0, %s121
      %s122 = sphi 0, %s119
      %s123 = sphi 0, %s122
      %s139 = sphi 0, %s123
      %s143 = sphi 0, %s143
      %s145 = sphi 0, %s143
      %s146 = sphi 0, %s145
      %s160 = sphi 0, %s146
      %s166 = sphi 0, %s168
      %s169 = sphi 0, %s166
      %s170 = sphi 0, %s169
      %s186 = sphi 0, %s170
    $region4: #{tpu_custom_call.1} parent=1 // loop_header_branch
      %25 = sbr.rel (%p23) target = $region8
    $region5: #{tpu_custom_call.1} parent=1 // loop_body
      %s27 = ssub.s32 %s22, 1
      %s28 = ssub.s32 %s22, 2
      %s35 = sadd.s32 1, %s30
      %p36 = scmp.ge.s32.totalorder %s35, 2
      %s37 = scalar_select %p36, 0, %s35
      %s38 = sadd.s32 1, %s29
      %s39 = scalar_select %p36, %s38, %s29
      %p40 = scmp.ge.s32.totalorder %s39, 2
      %s41 = scalar_select %p40, 0, %s39
      %s43 = sadd.s32 %s42, 1
      %p46 = scmp.eq.s32.totalorder %s22, 3
      %p47 = scmp.ne.s32.totalorder %s42, %s44
      %p48 = scmp.eq.s32.totalorder %s22, 0
      %p49 = por %p47, %p48
      %p50 = scmp.ne.s32.totalorder %s42, %s44
      %p51 = scmp.eq.s32.totalorder %s27, 3
      %p52 = por %p50, %p51
      %p53 = scmp.ne.s32.totalorder %s44, %s45
      %p54 = scmp.eq.s32.totalorder %s27, 0
      %p55 = por %p53, %p54
      %p56 = scmp.ne.s32.totalorder %s44, %s45
      %p57 = scmp.eq.s32.totalorder %s28, 3
      %p58 = por %p56, %p57
      %p60 = scmp.ne.s32.totalorder %s45, %s59
      %p61 = scmp.eq.s32.totalorder %s28, 0
      %p62 = por %p60, %p61
      %s63 = ssub.s32 %s29, %s41
      %s64 = ssub.s32 %s30, %s37
      %s65 = sor.u32 %s63, %s64
      %p66 = scmp.eq.s32.totalorder %s65, 0
      %s68 = sadd.s32 %s67, 1
      %s69 = scalar_select %p66, %s67, %s68
      %p72 = pneg %p66
      %p73 = scmp.eq.s32.totalorder %s22, 3
      %p74 = por %p72, %p73
      %p75 = scmp.ne.s32.totalorder %s67, %s70
      %p76 = scmp.eq.s32.totalorder %s22, 0
      %p77 = por %p75, %p76
      %p78 = scmp.ne.s32.totalorder %s67, %s70
      %p79 = scmp.eq.s32.totalorder %s27, 3
      %p80 = por %p78, %p79
      %p81 = scmp.ne.s32.totalorder %s70, %s71
      %p82 = scmp.eq.s32.totalorder %s27, 0
      %p83 = por %p81, %p82
      %p84 = scmp.ne.s32.totalorder %s70, %s71
      %p85 = scmp.eq.s32.totalorder %s28, 3
      %p86 = por %p84, %p85
      %p88 = scmp.ne.s32.totalorder %s71, %s87
      %p89 = scmp.eq.s32.totalorder %s28, 0
      %p90 = por %p88, %p89
      %s91 = ssub.s32 %s30, %s37
      %p92 = scmp.eq.s32.totalorder %s91, 0
      %s94 = sadd.s32 %s93, 1
      %s95 = scalar_select %p92, %s93, %s94
      %p98 = pneg %p92
      %p99 = scmp.eq.s32.totalorder %s22, 3
      %p100 = por %p98, %p99
      %p101 = scmp.ne.s32.totalorder %s93, %s96
      %p102 = scmp.eq.s32.totalorder %s22, 0
      %p103 = por %p101, %p102
      %p104 = scmp.ne.s32.totalorder %s93, %s96
      %p105 = scmp.eq.s32.totalorder %s27, 3
      %p106 = por %p104, %p105
      %p107 = scmp.ne.s32.totalorder %s96, %s97
      %p108 = scmp.eq.s32.totalorder %s27, 0
      %p109 = por %p107, %p108
      %p110 = scmp.ne.s32.totalorder %s96, %s97
      %p111 = scmp.eq.s32.totalorder %s28, 3
      %p112 = por %p110, %p111
      %p114 = scmp.ne.s32.totalorder %s97, %s113
      %p115 = scmp.eq.s32.totalorder %s28, 0
      %p116 = por %p114, %p115
      %s117 = ssub.s32 %s29, %s41
      %p118 = scmp.eq.s32.totalorder %s117, 0
      %s120 = sadd.s32 %s119, 1
      %s121 = scalar_select %p118, %s119, %s120
      %p124 = pneg %p118
      %p125 = scmp.eq.s32.totalorder %s22, 3
      %p126 = por %p124, %p125
      %p127 = scmp.ne.s32.totalorder %s119, %s122
      %p128 = scmp.eq.s32.totalorder %s22, 0
      %p129 = por %p127, %p128
      %p130 = scmp.ne.s32.totalorder %s119, %s122
      %p131 = scmp.eq.s32.totalorder %s27, 3
      %p132 = por %p130, %p131
      %p133 = scmp.ne.s32.totalorder %s122, %s123
      %p134 = scmp.eq.s32.totalorder %s27, 0
      %p135 = por %p133, %p134
      %p136 = scmp.ne.s32.totalorder %s122, %s123
      %p137 = scmp.eq.s32.totalorder %s28, 3
      %p138 = por %p136, %p137
      %p140 = scmp.ne.s32.totalorder %s123, %s139
      %p141 = scmp.eq.s32.totalorder %s28, 0
      %p142 = por %p140, %p141
      %s144 = sadd.s32 %s143, 1
      %p147 = scmp.eq.s32.totalorder %s22, 3
      %p148 = scmp.ne.s32.totalorder %s143, %s145
      %p149 = scmp.eq.s32.totalorder %s22, 0
      %p150 = por %p148, %p149
      %p151 = scmp.ne.s32.totalorder %s143, %s145
      %p152 = scmp.eq.s32.totalorder %s27, 3
      %p153 = por %p151, %p152
      %p154 = scmp.ne.s32.totalorder %s145, %s146
      %p155 = scmp.eq.s32.totalorder %s27, 0
      %p156 = por %p154, %p155
      %p157 = scmp.ne.s32.totalorder %s145, %s146
      %p158 = scmp.eq.s32.totalorder %s28, 3
      %p159 = por %p157, %p158
      %p161 = scmp.ne.s32.totalorder %s146, %s160
      %p162 = scmp.eq.s32.totalorder %s28, 0
      %p163 = por %p161, %p162
      %s164 = ssub.s32 %s29, %s41
      %p165 = scmp.eq.s32.totalorder %s164, 0
      %s167 = sadd.s32 %s166, 1
      %s168 = scalar_select %p165, %s166, %s167
      %p171 = pneg %p165
      %p172 = scmp.eq.s32.totalorder %s22, 3
      %p173 = por %p171, %p172
      %p174 = scmp.ne.s32.totalorder %s166, %s169
      %p175 = scmp.eq.s32.totalorder %s22, 0
      %p176 = por %p174, %p175
      %p177 = scmp.ne.s32.totalorder %s166, %s169
      %p178 = scmp.eq.s32.totalorder %s27, 3
      %p179 = por %p177, %p178
      %p180 = scmp.ne.s32.totalorder %s169, %s170
      %p181 = scmp.eq.s32.totalorder %s27, 0
      %p182 = por %p180, %p181
      %p183 = scmp.ne.s32.totalorder %s169, %s170
      %p184 = scmp.eq.s32.totalorder %s28, 3
      %p185 = por %p183, %p184
      %p187 = scmp.ne.s32.totalorder %s170, %s186
      %p188 = scmp.eq.s32.totalorder %s28, 0
      %p189 = por %p187, %p188
      %p190 = scmp.le.s32.totalorder 1, %s22
      %p191 = scmp.lt.s32.totalorder %s22, 5
      %p192 = pnand %p190, %p191
      %p193 = pneg %p192
      // Predicated region
      $region9: #{tpu_custom_call.1} parent=5 // pred_check
        _
      $region10: #{tpu_custom_call.1} parent=5 // pred_check_branch
        %195 = sbr.rel (%p192) target = $region12
      $region11: #{tpu_custom_call.1} parent=5 // pred_region
        %s196 = ssub.s32 %s22, 1
        // Predicated region
        $region13: #{tpu_custom_call.1} parent=11 // pred_check
          %p197 = pneg %p55
        $region14: #{tpu_custom_call.1} parent=11 // pred_check_branch
          %199 = sbr.rel (%p197) target = $region16
        $region15: #{tpu_custom_call.1} parent=11 // pred_region
          %s201 = ssub.s32 16, 16
          %202 = vsyncadd [#allocation6], %s201
          %205 = dma.hbm_to_smem %s0, 16, [#allocation3], [#allocation6]
        $region16: #{tpu_custom_call.1} parent=11 // pred_fallthru
          _
        // Predicated region
        $region17: #{tpu_custom_call.1} parent=11 // pred_check
          %p206 = pneg %p156
        $region18: #{tpu_custom_call.1} parent=11 // pred_check_branch
          %208 = sbr.rel (%p206) target = $region20
        $region19: #{tpu_custom_call.1} parent=11 // pred_region
          %s210 = ssub.s32 2048, 2048
          %211 = vsyncadd [#allocation12], %s210
          %s212 = sshll.u32 [#allocation11], 4
          %s213 = int_to_ptr.vmem [resolvable:$true] %s212
          %218 = dma.hbm_to_vmem [thread:$0]  %s4, 2048, %s213, [#allocation12], 128, 128, 8
        $region20: #{tpu_custom_call.1} parent=11 // pred_fallthru
          _
      $region12: #{tpu_custom_call.1} parent=5 // pred_fallthru
        _
      %p219 = scmp.lt.s32.totalorder %s22, 4
      // Predicated region
      $region21: #{tpu_custom_call.1} parent=5 // pred_check
        %p220 = pneg %p219
      $region22: #{tpu_custom_call.1} parent=5 // pred_check_branch
        %222 = sbr.rel (%p220) target = $region24
      $region23: #{tpu_custom_call.1} parent=5 // pred_region
        // Predicated region
        $region25: #{tpu_custom_call.1} parent=23 // pred_check
          %p223 = pneg %p77
        $region26: #{tpu_custom_call.1} parent=23 // pred_check_branch
          %225 = sbr.rel (%p223) target = $region28
        $region27: #{tpu_custom_call.1} parent=23 // pred_region
          %s226 = sand.u32 %s67, 1
          %s227 = scalar_lea.sflag [#allocation4], %s226
          %s228 = sand.u32 %s67, 1
          %s229 = smul.addr %s228, 128
          %s230 = scalar_lea.vmem [#allocation7], %s229
          %s231 = smul.u32 16, %s29
          %s233 = ssub.s32 2048, 2048
          %234 = vsyncadd %s227, %s233
          %s235 = smul.addr %s231, 2
          %s236 = sadd.s32 %s30, %s235
          %s237 = smul.addr %s236, 128
          %s238 = scalar_lea.hbm %s1, %s237
          %s239 = sshll.u32 %s230, 4
          %s240 = int_to_ptr.vmem [resolvable:$true] %s239
          %245 = dma.hbm_to_vmem [thread:$0]  %s238, 2048, %s240, %s227, 256, 128, 8
        $region28: #{tpu_custom_call.1} parent=23 // pred_fallthru
          _
        // Predicated region
        $region29: #{tpu_custom_call.1} parent=23 // pred_check
          %p246 = pneg %p103
        $region30: #{tpu_custom_call.1} parent=23 // pred_check_branch
          %248 = sbr.rel (%p246) target = $region32
        $region31: #{tpu_custom_call.1} parent=23 // pred_region
          %s249 = sand.u32 %s22, 1
          %s250 = scalar_lea.sflag [#allocation9], %s249
          %s251 = sand.u32 %s93, 1
          %s252 = smul.addr %s251, 128
          %s253 = scalar_lea.vmem [#allocation8], %s252
          %s254 = smul.u32 16, %s30
          %s256 = ssub.s32 2048, 2048
          %257 = vsyncadd %s250, %s256
          %s258 = smul.addr %s254, 128
          %s259 = scalar_lea.hbm %s2, %s258
          %s260 = sshll.u32 %s253, 4
          %s261 = int_to_ptr.vmem [resolvable:$true] %s260
          %266 = dma.hbm_to_vmem [thread:$0]  %s259, 2048, %s261, %s250, 128, 128, 8
        $region32: #{tpu_custom_call.1} parent=23 // pred_fallthru
          _
        // Predicated region
        $region33: #{tpu_custom_call.1} parent=23 // pred_check
          %p267 = pneg %p129
        $region34: #{tpu_custom_call.1} parent=23 // pred_check_branch
          %269 = sbr.rel (%p267) target = $region36
        $region35: #{tpu_custom_call.1} parent=23 // pred_region
          %s270 = sand.u32 %s22, 1
          %s271 = scalar_lea.sflag [#allocation9], %s270
          %s272 = sand.u32 %s119, 1
          %s273 = smul.addr %s272, 128
          %s274 = scalar_lea.vmem [#allocation10], %s273
          %s275 = smul.u32 16, %s29
          %s277 = ssub.s32 2048, 2048
          %278 = vsyncadd %s271, %s277
          %s279 = smul.addr %s275, 128
          %s280 = scalar_lea.hbm %s3, %s279
          %s281 = sshll.u32 %s274, 4
          %s282 = int_to_ptr.vmem [resolvable:$true] %s281
          %287 = dma.hbm_to_vmem [thread:$0]  %s280, 2048, %s282, %s271, 128, 128, 8
        $region36: #{tpu_custom_call.1} parent=23 // pred_fallthru
          _
      $region24: #{tpu_custom_call.1} parent=5 // pred_fallthru
        _
      %p288 = scmp.le.s32.totalorder 1, %s22
      %p289 = scmp.lt.s32.totalorder %s22, 5
      %p290 = pnand %p288, %p289
      %p291 = pneg %p290
      // Predicated region
      $region37: #{tpu_custom_call.1} parent=5 // pred_check
        _
      $region38: #{tpu_custom_call.1} parent=5 // pred_check_branch
        %293 = sbr.rel (%p290) target = $region40
      $region39: #{tpu_custom_call.1} parent=5 // pred_region
        %s294 = ssub.s32 %s22, 1
        // Predicated region
        $region41: #{tpu_custom_call.1} parent=39 // pred_check
          %p295 = pneg %p55
        $region42: #{tpu_custom_call.1} parent=39 // pred_check_branch
          %297 = sbr.rel (%p295) target = $region44
        $region43: #{tpu_custom_call.1} parent=39 // pred_region
          %298 = dma.done [#allocation6], 16
        $region44: #{tpu_custom_call.1} parent=39 // pred_fallthru
          _
        %s299 = sand.u32 %s70, 1
        %s300 = scalar_lea.sflag [#allocation4], %s299
        %s301 = sand.u32 %s70, 1
        %s302 = smul.addr %s301, 128
        %s303 = scalar_lea.vmem [#allocation7], %s302
        // Predicated region
        $region45: #{tpu_custom_call.1} parent=39 // pred_check
          %p304 = pneg %p83
        $region46: #{tpu_custom_call.1} parent=39 // pred_check_branch
          %306 = sbr.rel (%p304) target = $region48
        $region47: #{tpu_custom_call.1} parent=39 // pred_region
          %307 = dma.done %s300, 2048
        $region48: #{tpu_custom_call.1} parent=39 // pred_fallthru
          _
        %s308 = sand.u32 %s27, 1
        %s309 = scalar_lea.sflag [#allocation9], %s308
        %s310 = sand.u32 %s96, 1
        %s311 = smul.addr %s310, 128
        %s312 = scalar_lea.vmem [#allocation8], %s311
        // Predicated region
        $region49: #{tpu_custom_call.1} parent=39 // pred_check
          %p313 = pneg %p109
        $region50: #{tpu_custom_call.1} parent=39 // pred_check_branch
          %315 = sbr.rel (%p313) target = $region52
        $region51: #{tpu_custom_call.1} parent=39 // pred_region
          %316 = dma.done %s309, 2048
        $region52: #{tpu_custom_call.1} parent=39 // pred_fallthru
          _
        %s317 = sand.u32 %s27, 1
        %s318 = scalar_lea.sflag [#allocation9], %s317
        %s319 = sand.u32 %s122, 1
        %s320 = smul.addr %s319, 128
        %s321 = scalar_lea.vmem [#allocation10], %s320
        // Predicated region
        $region53: #{tpu_custom_call.1} parent=39 // pred_check
          %p322 = pneg %p135
        $region54: #{tpu_custom_call.1} parent=39 // pred_check_branch
          %324 = sbr.rel (%p322) target = $region56
        $region55: #{tpu_custom_call.1} parent=39 // pred_region
          %325 = dma.done %s318, 2048
        $region56: #{tpu_custom_call.1} parent=39 // pred_fallthru
          _
        // Predicated region
        $region57: #{tpu_custom_call.1} parent=39 // pred_check
          %p326 = pneg %p156
        $region58: #{tpu_custom_call.1} parent=39 // pred_check_branch
          %328 = sbr.rel (%p326) target = $region60
        $region59: #{tpu_custom_call.1} parent=39 // pred_region
          %329 = dma.done [#allocation12], 2048
        $region60: #{tpu_custom_call.1} parent=39 // pred_fallthru
          _
        %330 = sfence
        %p331 = pneg %p55
        %p332 = pneg %p52
        %s333 = sand.u32 %s70, 1
        %s334 = scalar_lea.sflag [#allocation4], %s333
        %s335 = sand.u32 %s70, 1
        %s336 = smul.addr %s335, 128
        %s337 = scalar_lea.vmem [#allocation7], %s336
        %p338 = pneg %p83
        %p339 = pneg %p80
        %s340 = sand.u32 %s27, 1
        %s341 = scalar_lea.sflag [#allocation9], %s340
        %s342 = sand.u32 %s96, 1
        %s343 = smul.addr %s342, 128
        %s344 = scalar_lea.vmem [#allocation8], %s343
        %p345 = pneg %p109
        %p346 = pneg %p106
        %s347 = sand.u32 %s27, 1
        %s348 = scalar_lea.sflag [#allocation9], %s347
        %s349 = sand.u32 %s122, 1
        %s350 = smul.addr %s349, 128
        %s351 = scalar_lea.vmem [#allocation10], %s350
        %p352 = pneg %p135
        %p353 = pneg %p132
        %p354 = pneg %p156
        %p355 = pneg %p153
        %p356 = pneg %p182
        %p357 = pneg %p179
        %s358 = sand.u32 %s169, 1
        %s359 = scalar_lea.sflag [#allocation5], %s358
        %s360 = sand.u32 %s169, 1
        %s361 = smul.addr %s360, 128
        %s362 = scalar_lea.vmem [#allocation13], %s361
        %s363 = smul.u32 16, %s31
        %s364 = smul.u32 16, %s32
        %s365 = smul.u32 16, %s31
        %s366 = smul.u32 16, %s31
        %p367 = scmp.eq.s32.totalorder %s32, 0
        // Predicated region
        $region61: #{tpu_custom_call.1} parent=39 // pred_check
          %p368 = pneg %p367
        $region62: #{tpu_custom_call.1} parent=39 // pred_check_branch
          %370 = sbr.rel (%p368) target = $region64
        $region63: #{tpu_custom_call.1} parent=39 // pred_region
          %371 = vst [vmem:[#allocation2] sm:$0xff] 0.0
          %372 = vst [vmem:[#allocation2 + $0x8] sm:$0xff] 0.0
          %373 = vst [vmem:[#allocation2 + $0x10] sm:$0xff] 0.0
          %374 = vst [vmem:[#allocation2 + $0x18] sm:$0xff] 0.0
          %375 = vst [vmem:[#allocation2 + $0x20] sm:$0xff] 0.0
          %376 = vst [vmem:[#allocation2 + $0x28] sm:$0xff] 0.0
          %377 = vst [vmem:[#allocation2 + $0x30] sm:$0xff] 0.0
          %378 = vst [vmem:[#allocation2 + $0x38] sm:$0xff] 0.0
          %379 = vst [vmem:[#allocation2 + $0x40] sm:$0xff] 0.0
          %380 = vst [vmem:[#allocation2 + $0x48] sm:$0xff] 0.0
          %381 = vst [vmem:[#allocation2 + $0x50] sm:$0xff] 0.0
          %382 = vst [vmem:[#allocation2 + $0x58] sm:$0xff] 0.0
          %383 = vst [vmem:[#allocation2 + $0x60] sm:$0xff] 0.0
          %384 = vst [vmem:[#allocation2 + $0x68] sm:$0xff] 0.0
          %385 = vst [vmem:[#allocation2 + $0x70] sm:$0xff] 0.0
          %386 = vst [vmem:[#allocation2 + $0x78] sm:$0xff] 0.0
        $region64: #{tpu_custom_call.1} parent=39 // pred_fallthru
          _
        %v387 = vld [vmem:[#allocation2] sm:$0xff]
        %v388 = vld [vmem:[#allocation2 + $0x8] sm:$0xff]
        %v389 = vld [vmem:[#allocation2 + $0x10] sm:$0xff]
        %v390 = vld [vmem:[#allocation2 + $0x18] sm:$0xff]
        %v391 = vld [vmem:[#allocation2 + $0x20] sm:$0xff]
        %v392 = vld [vmem:[#allocation2 + $0x28] sm:$0xff]
        %v393 = vld [vmem:[#allocation2 + $0x30] sm:$0xff]
        %v394 = vld [vmem:[#allocation2 + $0x38] sm:$0xff]
        %v395 = vld [vmem:[#allocation2 + $0x40] sm:$0xff]
        %v396 = vld [vmem:[#allocation2 + $0x48] sm:$0xff]
        %v397 = vld [vmem:[#allocation2 + $0x50] sm:$0xff]
        %v398 = vld [vmem:[#allocation2 + $0x58] sm:$0xff]
        %v399 = vld [vmem:[#allocation2 + $0x60] sm:$0xff]
        %v400 = vld [vmem:[#allocation2 + $0x68] sm:$0xff]
        %v401 = vld [vmem:[#allocation2 + $0x70] sm:$0xff]
        %v402 = vld [vmem:[#allocation2 + $0x78] sm:$0xff]
        %v403 = vld [vmem:[%s303] sm:$0xff]
        %v404 = vld [vmem:[%s303 + $0x8] sm:$0xff]
        %v405 = vld [vmem:[%s303 + $0x10] sm:$0xff]
        %v406 = vld [vmem:[%s303 + $0x18] sm:$0xff]
        %v407 = vld [vmem:[%s303 + $0x20] sm:$0xff]
        %v408 = vld [vmem:[%s303 + $0x28] sm:$0xff]
        %v409 = vld [vmem:[%s303 + $0x30] sm:$0xff]
        %v410 = vld [vmem:[%s303 + $0x38] sm:$0xff]
        %v411 = vld [vmem:[%s303 + $0x40] sm:$0xff]
        %v412 = vld [vmem:[%s303 + $0x48] sm:$0xff]
        %v413 = vld [vmem:[%s303 + $0x50] sm:$0xff]
        %v414 = vld [vmem:[%s303 + $0x58] sm:$0xff]
        %v415 = vld [vmem:[%s303 + $0x60] sm:$0xff]
        %v416 = vld [vmem:[%s303 + $0x68] sm:$0xff]
        %v417 = vld [vmem:[%s303 + $0x70] sm:$0xff]
        %v418 = vld [vmem:[%s303 + $0x78] sm:$0xff]
        %v419 = vld [vmem:[%s312] sm:$0xff]
        %v420 = vld [vmem:[%s312 + $0x8] sm:$0xff]
        %v421 = vld [vmem:[%s312 + $0x10] sm:$0xff]
        %v422 = vld [vmem:[%s312 + $0x18] sm:$0xff]
        %v423 = vld [vmem:[%s312 + $0x20] sm:$0xff]
        %v424 = vld [vmem:[%s312 + $0x28] sm:$0xff]
        %v425 = vld [vmem:[%s312 + $0x30] sm:$0xff]
        %v426 = vld [vmem:[%s312 + $0x38] sm:$0xff]
        %v427 = vld [vmem:[%s312 + $0x40] sm:$0xff]
        %v428 = vld [vmem:[%s312 + $0x48] sm:$0xff]
        %v429 = vld [vmem:[%s312 + $0x50] sm:$0xff]
        %v430 = vld [vmem:[%s312 + $0x58] sm:$0xff]
        %v431 = vld [vmem:[%s312 + $0x60] sm:$0xff]
        %v432 = vld [vmem:[%s312 + $0x68] sm:$0xff]
        %v433 = vld [vmem:[%s312 + $0x70] sm:$0xff]
        %v434 = vld [vmem:[%s312 + $0x78] sm:$0xff]
        %435 = vmatprep.subr.mxu0 0.0
        %436 = vmatpush1.msra.mxu0 %v419
        %437 = vmatprep.subr.mxu0 0.0
        %438 = vmatpush1.msra.mxu0 %v420
        %439 = vmatprep.subr.mxu0 0.0
        %440 = vmatpush1.msra.mxu0 %v421
        %441 = vmatprep.subr.mxu0 0.0
        %442 = vmatpush1.msra.mxu0 %v422
        %443 = vmatprep.subr.mxu0 0.0
        %444 = vmatpush1.msra.mxu0 %v423
        %445 = vmatprep.subr.mxu0 0.0
        %446 = vmatpush1.msra.mxu0 %v424
        %447 = vmatprep.subr.mxu0 0.0
        %448 = vmatpush1.msra.mxu0 %v425
        %449 = vmatprep.subr.mxu0 0.0
        %450 = vmatpush1.msra.mxu0 %v426
        %451 = vmatprep.subr.mxu0 0.0
        %452 = vmatpush1.msra.mxu0 %v427
        %453 = vmatprep.subr.mxu0 0.0
        %454 = vmatpush1.msra.mxu0 %v428
        %455 = vmatprep.subr.mxu0 0.0
        %456 = vmatpush1.msra.mxu0 %v429
        %457 = vmatprep.subr.mxu0 0.0
        %458 = vmatpush1.msra.mxu0 %v430
        %459 = vmatprep.subr.mxu0 0.0
        %460 = vmatpush1.msra.mxu0 %v431
        %461 = vmatprep.subr.mxu0 0.0
        %462 = vmatpush1.msra.mxu0 %v432
        %463 = vmatprep.subr.mxu0 0.0
        %464 = vmatpush1.msra.mxu0 %v433
        %465 = vmatprep.subr.mxu0 0.0
        %466 = vmatpush1.msra.mxu0 %v434
        %467 = vmatprep.subr.mxu0 0.0
        %468 = vmatpush1.msra.mxu0 0.0
        %469 = vmatprep.subr.mxu0 0.0
        %470 = vmatpush1.msra.mxu0 0.0
        %471 = vmatprep.subr.mxu0 0.0
        %472 = vmatpush1.msra.mxu0 0.0
        %473 = vmatprep.subr.mxu0 0.0
        %474 = vmatpush1.msra.mxu0 0.0
        %475 = vmatprep.subr.mxu0 0.0
        %476 = vmatpush1.msra.mxu0 0.0
        %477 = vmatprep.subr.mxu0 0.0
        %478 = vmatpush1.msra.mxu0 0.0
        %479 = vmatprep.subr.mxu0 0.0
        %480 = vmatpush1.msra.mxu0 0.0
        %481 = vmatprep.subr.mxu0 0.0
        %482 = vmatpush1.msra.mxu0 0.0
        %483 = vmatprep.subr.mxu0 0.0
        %484 = vmatpush1.msra.mxu0 0.0
        %485 = vmatprep.subr.mxu0 0.0
        %486 = vmatpush1.msra.mxu0 0.0
        %487 = vmatprep.subr.mxu0 0.0
        %488 = vmatpush1.msra.mxu0 0.0
        %489 = vmatprep.subr.mxu0 0.0
        %490 = vmatpush1.msra.mxu0 0.0
        %491 = vmatprep.subr.mxu0 0.0
        %492 = vmatpush1.msra.mxu0 0.0
        %493 = vmatprep.subr.mxu0 0.0
        %494 = vmatpush1.msra.mxu0 0.0
        %495 = vmatprep.subr.mxu0 0.0
        %496 = vmatpush1.msra.mxu0 0.0
        %497 = vmatprep.subr.mxu0 0.0
        %498 = vmatpush1.msra.mxu0 0.0
        %499 = vmatprep.mubr.f32.mxu0 0.0
        %500 = vmatmul.mubr.f32.gmra.mrb[0].mxu0 %v403
        %v501 = vpop.f32.mrb[0].mxu0
        %v502 = vadd.f32 0.0, %v501
        %v503 = vpop.f32.mrb[0].mxu0
        %504 = vmatprep.mubr.f32.mxu0 0.0
        %505 = vmatmul.mubr.f32.gmra.mrb[0].mxu0 %v404
        %v506 = vpop.f32.mrb[0].mxu0
        %v507 = vadd.f32 0.0, %v506
        %v508 = vpop.f32.mrb[0].mxu0
        %509 = vmatprep.mubr.f32.mxu0 0.0
        %510 = vmatmul.mubr.f32.gmra.mrb[0].mxu0 %v405
        %v511 = vpop.f32.mrb[0].mxu0
        %v512 = vadd.f32 0.0, %v511
        %v513 = vpop.f32.mrb[0].mxu0
        %514 = vmatprep.mubr.f32.mxu0 0.0
        %515 = vmatmul.mubr.f32.gmra.mrb[0].mxu0 %v406
        %v516 = vpop.f32.mrb[0].mxu0
        %v517 = vadd.f32 0.0, %v516
        %v518 = vpop.f32.mrb[0].mxu0
        %519 = vmatprep.mubr.f32.mxu0 0.0
        %520 = vmatmul.mubr.f32.gmra.mrb[0].mxu0 %v407
        %v521 = vpop.f32.mrb[0].mxu0
        %v522 = vadd.f32 0.0, %v521
        %v523 = vpop.f32.mrb[0].mxu0
        %524 = vmatprep.mubr.f32.mxu0 0.0
        %525 = vmatmul.mubr.f32.gmra.mrb[0].mxu0 %v408
        %v526 = vpop.f32.mrb[0].mxu0
        %v527 = vadd.f32 0.0, %v526
        %v528 = vpop.f32.mrb[0].mxu0
        %529 = vmatprep.mubr.f32.mxu0 0.0
        %530 = vmatmul.mubr.f32.gmra.mrb[0].mxu0 %v409
        %v531 = vpop.f32.mrb[0].mxu0
        %v532 = vadd.f32 0.0, %v531
        %v533 = vpop.f32.mrb[0].mxu0
        %534 = vmatprep.mubr.f32.mxu0 0.0
        %535 = vmatmul.mubr.f32.gmra.mrb[0].mxu0 %v410
        %v536 = vpop.f32.mrb[0].mxu0
        %v537 = vadd.f32 0.0, %v536
        %v538 = vpop.f32.mrb[0].mxu0
        %539 = vmatprep.mubr.f32.mxu0 0.0
        %540 = vmatmul.mubr.f32.gmra.mrb[0].mxu0 %v411
        %v541 = vpop.f32.mrb[0].mxu0
        %v542 = vadd.f32 0.0, %v541
        %v543 = vpop.f32.mrb[0].mxu0
        %544 = vmatprep.mubr.f32.mxu0 0.0
        %545 = vmatmul.mubr.f32.gmra.mrb[0].mxu0 %v412
        %v546 = vpop.f32.mrb[0].mxu0
        %v547 = vadd.f32 0.0, %v546
        %v548 = vpop.f32.mrb[0].mxu0
        %549 = vmatprep.mubr.f32.mxu0 0.0
        %550 = vmatmul.mubr.f32.gmra.mrb[0].mxu0 %v413
        %v551 = vpop.f32.mrb[0].mxu0
        %v552 = vadd.f32 0.0, %v551
        %v553 = vpop.f32.mrb[0].mxu0
        %554 = vmatprep.mubr.f32.mxu0 0.0
        %555 = vmatmul.mubr.f32.gmra.mrb[0].mxu0 %v414
        %v556 = vpop.f32.mrb[0].mxu0
        %v557 = vadd.f32 0.0, %v556
        %v558 = vpop.f32.mrb[0].mxu0
        %559 = vmatprep.mubr.f32.mxu0 0.0
        %560 = vmatmul.mubr.f32.gmra.mrb[0].mxu0 %v415
        %v561 = vpop.f32.mrb[0].mxu0
        %v562 = vadd.f32 0.0, %v561
        %v563 = vpop.f32.mrb[0].mxu0
        %564 = vmatprep.mubr.f32.mxu0 0.0
        %565 = vmatmul.mubr.f32.gmra.mrb[0].mxu0 %v416
        %v566 = vpop.f32.mrb[0].mxu0
        %v567 = vadd.f32 0.0, %v566
        %v568 = vpop.f32.mrb[0].mxu0
        %569 = vmatprep.mubr.f32.mxu0 0.0
        %570 = vmatmul.mubr.f32.gmra.mrb[0].mxu0 %v417
        %v571 = vpop.f32.mrb[0].mxu0
        %v572 = vadd.f32 0.0, %v571
        %v573 = vpop.f32.mrb[0].mxu0
        %574 = vmatprep.mubr.f32.mxu0 0.0
        %575 = vmatmul.mubr.f32.gmra.mrb[0].mxu0 %v418
        %v576 = vpop.f32.mrb[0].mxu0
        %v577 = vadd.f32 0.0, %v576
        %v578 = vpop.f32.mrb[0].mxu0
        %579 = vdwg.mxu0
        %v580 = vadd.f32 %v387, %v502
        %v581 = vadd.f32 %v388, %v507
        %v582 = vadd.f32 %v389, %v512
        %v583 = vadd.f32 %v390, %v517
        %v584 = vadd.f32 %v391, %v522
        %v585 = vadd.f32 %v392, %v527
        %v586 = vadd.f32 %v393, %v532
        %v587 = vadd.f32 %v394, %v537
        %v588 = vadd.f32 %v395, %v542
        %v589 = vadd.f32 %v396, %v547
        %v590 = vadd.f32 %v397, %v552
        %v591 = vadd.f32 %v398, %v557
        %v592 = vadd.f32 %v399, %v562
        %v593 = vadd.f32 %v400, %v567
        %v594 = vadd.f32 %v401, %v572
        %v595 = vadd.f32 %v402, %v577
        %596 = vst [vmem:[#allocation2] sm:$0xff] %v580
        %597 = vst [vmem:[#allocation2 + $0x8] sm:$0xff] %v581
        %598 = vst [vmem:[#allocation2 + $0x10] sm:$0xff] %v582
        %599 = vst [vmem:[#allocation2 + $0x18] sm:$0xff] %v583
        %600 = vst [vmem:[#allocation2 + $0x20] sm:$0xff] %v584
        %601 = vst [vmem:[#allocation2 + $0x28] sm:$0xff] %v585
        %602 = vst [vmem:[#allocation2 + $0x30] sm:$0xff] %v586
        %603 = vst [vmem:[#allocation2 + $0x38] sm:$0xff] %v587
        %604 = vst [vmem:[#allocation2 + $0x40] sm:$0xff] %v588
        %605 = vst [vmem:[#allocation2 + $0x48] sm:$0xff] %v589
        %606 = vst [vmem:[#allocation2 + $0x50] sm:$0xff] %v590
        %607 = vst [vmem:[#allocation2 + $0x58] sm:$0xff] %v591
        %608 = vst [vmem:[#allocation2 + $0x60] sm:$0xff] %v592
        %609 = vst [vmem:[#allocation2 + $0x68] sm:$0xff] %v593
        %610 = vst [vmem:[#allocation2 + $0x70] sm:$0xff] %v594
        %611 = vst [vmem:[#allocation2 + $0x78] sm:$0xff] %v595
        %p612 = scmp.eq.s32.totalorder %s32, 1
        // Predicated region
        $region65: #{tpu_custom_call.1} parent=39 // pred_check
          %p613 = pneg %p612
        $region66: #{tpu_custom_call.1} parent=39 // pred_check_branch
          %615 = sbr.rel (%p613) target = $region68
        $region67: #{tpu_custom_call.1} parent=39 // pred_region
          %s616 = sld [smem:[#allocation3]]
          %s617 = sld [smem:[#allocation3 + $0x1]]
          %v618 = vld [vmem:[#allocation2] sm:$0xff]
          %v619 = vld [vmem:[#allocation2 + $0x8] sm:$0xff]
          %v620 = vld [vmem:[#allocation2 + $0x10] sm:$0xff]
          %v621 = vld [vmem:[#allocation2 + $0x18] sm:$0xff]
          %v622 = vld [vmem:[#allocation2 + $0x20] sm:$0xff]
          %v623 = vld [vmem:[#allocation2 + $0x28] sm:$0xff]
          %v624 = vld [vmem:[#allocation2 + $0x30] sm:$0xff]
          %v625 = vld [vmem:[#allocation2 + $0x38] sm:$0xff]
          %v626 = vld [vmem:[#allocation2 + $0x40] sm:$0xff]
          %v627 = vld [vmem:[#allocation2 + $0x48] sm:$0xff]
          %v628 = vld [vmem:[#allocation2 + $0x50] sm:$0xff]
          %v629 = vld [vmem:[#allocation2 + $0x58] sm:$0xff]
          %v630 = vld [vmem:[#allocation2 + $0x60] sm:$0xff]
          %v631 = vld [vmem:[#allocation2 + $0x68] sm:$0xff]
          %v632 = vld [vmem:[#allocation2 + $0x70] sm:$0xff]
          %v633 = vld [vmem:[#allocation2 + $0x78] sm:$0xff]
          %s634 = ssub.f32 1.0, %s616
          %v635 = vstv %s634
          %v636 = vmul.f32 %v635, %v618
          %v637 = vmul.f32 %v635, %v619
          %v638 = vmul.f32 %v635, %v620
          %v639 = vmul.f32 %v635, %v621
          %v640 = vmul.f32 %v635, %v622
          %v641 = vmul.f32 %v635, %v623
          %v642 = vmul.f32 %v635, %v624
          %v643 = vmul.f32 %v635, %v625
          %v644 = vmul.f32 %v635, %v626
          %v645 = vmul.f32 %v635, %v627
          %v646 = vmul.f32 %v635, %v628
          %v647 = vmul.f32 %v635, %v629
          %v648 = vmul.f32 %v635, %v630
          %v649 = vmul.f32 %v635, %v631
          %v650 = vmul.f32 %v635, %v632
          %v651 = vmul.f32 %v635, %v633
          %v652 = vld [vmem:[%s321] sm:$0xff]
          %v653 = vld [vmem:[%s321 + $0x8] sm:$0xff]
          %v654 = vld [vmem:[%s321 + $0x10] sm:$0xff]
          %v655 = vld [vmem:[%s321 + $0x18] sm:$0xff]
          %v656 = vld [vmem:[%s321 + $0x20] sm:$0xff]
          %v657 = vld [vmem:[%s321 + $0x28] sm:$0xff]
          %v658 = vld [vmem:[%s321 + $0x30] sm:$0xff]
          %v659 = vld [vmem:[%s321 + $0x38] sm:$0xff]
          %v660 = vld [vmem:[%s321 + $0x40] sm:$0xff]
          %v661 = vld [vmem:[%s321 + $0x48] sm:$0xff]
          %v662 = vld [vmem:[%s321 + $0x50] sm:$0xff]
          %v663 = vld [vmem:[%s321 + $0x58] sm:$0xff]
          %v664 = vld [vmem:[%s321 + $0x60] sm:$0xff]
          %v665 = vld [vmem:[%s321 + $0x68] sm:$0xff]
          %v666 = vld [vmem:[%s321 + $0x70] sm:$0xff]
          %v667 = vld [vmem:[%s321 + $0x78] sm:$0xff]
          %v668 = vstv %s616
          %v669 = vmul.f32 %v668, %v652
          %v670 = vmul.f32 %v668, %v653
          %v671 = vmul.f32 %v668, %v654
          %v672 = vmul.f32 %v668, %v655
          %v673 = vmul.f32 %v668, %v656
          %v674 = vmul.f32 %v668, %v657
          %v675 = vmul.f32 %v668, %v658
          %v676 = vmul.f32 %v668, %v659
          %v677 = vmul.f32 %v668, %v660
          %v678 = vmul.f32 %v668, %v661
          %v679 = vmul.f32 %v668, %v662
          %v680 = vmul.f32 %v668, %v663
          %v681 = vmul.f32 %v668, %v664
          %v682 = vmul.f32 %v668, %v665
          %v683 = vmul.f32 %v668, %v666
          %v684 = vmul.f32 %v668, %v667
          %v685 = vadd.f32 %v636, %v669
          %v686 = vadd.f32 %v637, %v670
          %v687 = vadd.f32 %v638, %v671
          %v688 = vadd.f32 %v639, %v672
          %v689 = vadd.f32 %v640, %v673
          %v690 = vadd.f32 %v641, %v674
          %v691 = vadd.f32 %v642, %v675
          %v692 = vadd.f32 %v643, %v676
          %v693 = vadd.f32 %v644, %v677
          %v694 = vadd.f32 %v645, %v678
          %v695 = vadd.f32 %v646, %v679
          %v696 = vadd.f32 %v647, %v680
          %v697 = vadd.f32 %v648, %v681
          %v698 = vadd.f32 %v649, %v682
          %v699 = vadd.f32 %v650, %v683
          %v700 = vadd.f32 %v651, %v684
          %v701 = vld [vmem:[#allocation11] sm:$0xff]
          %v702 = vld [vmem:[#allocation11 + $0x8] sm:$0xff]
          %v703 = vld [vmem:[#allocation11 + $0x10] sm:$0xff]
          %v704 = vld [vmem:[#allocation11 + $0x18] sm:$0xff]
          %v705 = vld [vmem:[#allocation11 + $0x20] sm:$0xff]
          %v706 = vld [vmem:[#allocation11 + $0x28] sm:$0xff]
          %v707 = vld [vmem:[#allocation11 + $0x30] sm:$0xff]
          %v708 = vld [vmem:[#allocation11 + $0x38] sm:$0xff]
          %v709 = vld [vmem:[#allocation11 + $0x40] sm:$0xff]
          %v710 = vld [vmem:[#allocation11 + $0x48] sm:$0xff]
          %v711 = vld [vmem:[#allocation11 + $0x50] sm:$0xff]
          %v712 = vld [vmem:[#allocation11 + $0x58] sm:$0xff]
          %v713 = vld [vmem:[#allocation11 + $0x60] sm:$0xff]
          %v714 = vld [vmem:[#allocation11 + $0x68] sm:$0xff]
          %v715 = vld [vmem:[#allocation11 + $0x70] sm:$0xff]
          %v716 = vld [vmem:[#allocation11 + $0x78] sm:$0xff]
          %717 = vmatprep.subr.mxu0 0.0
          %718 = vmatpush1.msra.mxu0 %v701
          %719 = vmatprep.subr.mxu0 0.0
          %720 = vmatpush1.msra.mxu0 %v702
          %721 = vmatprep.subr.mxu0 0.0
          %722 = vmatpush1.msra.mxu0 %v703
          %723 = vmatprep.subr.mxu0 0.0
          %724 = vmatpush1.msra.mxu0 %v704
          %725 = vmatprep.subr.mxu0 0.0
          %726 = vmatpush1.msra.mxu0 %v705
          %727 = vmatprep.subr.mxu0 0.0
          %728 = vmatpush1.msra.mxu0 %v706
          %729 = vmatprep.subr.mxu0 0.0
          %730 = vmatpush1.msra.mxu0 %v707
          %731 = vmatprep.subr.mxu0 0.0
          %732 = vmatpush1.msra.mxu0 %v708
          %733 = vmatprep.subr.mxu0 0.0
          %734 = vmatpush1.msra.mxu0 %v709
          %735 = vmatprep.subr.mxu0 0.0
          %736 = vmatpush1.msra.mxu0 %v710
          %737 = vmatprep.subr.mxu0 0.0
          %738 = vmatpush1.msra.mxu0 %v711
          %739 = vmatprep.subr.mxu0 0.0
          %740 = vmatpush1.msra.mxu0 %v712
          %741 = vmatprep.subr.mxu0 0.0
          %742 = vmatpush1.msra.mxu0 %v713
          %743 = vmatprep.subr.mxu0 0.0
          %744 = vmatpush1.msra.mxu0 %v714
          %745 = vmatprep.subr.mxu0 0.0
          %746 = vmatpush1.msra.mxu0 %v715
          %747 = vmatprep.subr.mxu0 0.0
          %748 = vmatpush1.msra.mxu0 %v716
          %749 = vmatprep.subr.mxu0 0.0
          %750 = vmatpush1.msra.mxu0 0.0
          %751 = vmatprep.subr.mxu0 0.0
          %752 = vmatpush1.msra.mxu0 0.0
          %753 = vmatprep.subr.mxu0 0.0
          %754 = vmatpush1.msra.mxu0 0.0
          %755 = vmatprep.subr.mxu0 0.0
          %756 = vmatpush1.msra.mxu0 0.0
          %757 = vmatprep.subr.mxu0 0.0
          %758 = vmatpush1.msra.mxu0 0.0
          %759 = vmatprep.subr.mxu0 0.0
          %760 = vmatpush1.msra.mxu0 0.0
          %761 = vmatprep.subr.mxu0 0.0
          %762 = vmatpush1.msra.mxu0 0.0
          %763 = vmatprep.subr.mxu0 0.0
          %764 = vmatpush1.msra.mxu0 0.0
          %765 = vmatprep.subr.mxu0 0.0
          %766 = vmatpush1.msra.mxu0 0.0
          %767 = vmatprep.subr.mxu0 0.0
          %768 = vmatpush1.msra.mxu0 0.0
          %769 = vmatprep.subr.mxu0 0.0
          %770 = vmatpush1.msra.mxu0 0.0
          %771 = vmatprep.subr.mxu0 0.0
          %772 = vmatpush1.msra.mxu0 0.0
          %773 = vmatprep.subr.mxu0 0.0
          %774 = vmatpush1.msra.mxu0 0.0
          %775 = vmatprep.subr.mxu0 0.0
          %776 = vmatpush1.msra.mxu0 0.0
          %777 = vmatprep.subr.mxu0 0.0
          %778 = vmatpush1.msra.mxu0 0.0
          %779 = vmatprep.subr.mxu0 0.0
          %780 = vmatpush1.msra.mxu0 0.0
          %781 = vmatprep.mubr.f32.mxu0 0.0
          %782 = vmatmul.mubr.f32.gmra.mrb[0].mxu0 %v685
          %v783 = vpop.f32.mrb[0].mxu0
          %v784 = vadd.f32 0.0, %v783
          %v785 = vpop.f32.mrb[0].mxu0
          %786 = vmatprep.mubr.f32.mxu0 0.0
          %787 = vmatmul.mubr.f32.gmra.mrb[0].mxu0 %v686
          %v788 = vpop.f32.mrb[0].mxu0
          %v789 = vadd.f32 0.0, %v788
          %v790 = vpop.f32.mrb[0].mxu0
          %791 = vmatprep.mubr.f32.mxu0 0.0
          %792 = vmatmul.mubr.f32.gmra.mrb[0].mxu0 %v687
          %v793 = vpop.f32.mrb[0].mxu0
          %v794 = vadd.f32 0.0, %v793
          %v795 = vpop.f32.mrb[0].mxu0
          %796 = vmatprep.mubr.f32.mxu0 0.0
          %797 = vmatmul.mubr.f32.gmra.mrb[0].mxu0 %v688
          %v798 = vpop.f32.mrb[0].mxu0
          %v799 = vadd.f32 0.0, %v798
          %v800 = vpop.f32.mrb[0].mxu0
          %801 = vmatprep.mubr.f32.mxu0 0.0
          %802 = vmatmul.mubr.f32.gmra.mrb[0].mxu0 %v689
          %v803 = vpop.f32.mrb[0].mxu0
          %v804 = vadd.f32 0.0, %v803
          %v805 = vpop.f32.mrb[0].mxu0
          %806 = vmatprep.mubr.f32.mxu0 0.0
          %807 = vmatmul.mubr.f32.gmra.mrb[0].mxu0 %v690
          %v808 = vpop.f32.mrb[0].mxu0
          %v809 = vadd.f32 0.0, %v808
          %v810 = vpop.f32.mrb[0].mxu0
          %811 = vmatprep.mubr.f32.mxu0 0.0
          %812 = vmatmul.mubr.f32.gmra.mrb[0].mxu0 %v691
          %v813 = vpop.f32.mrb[0].mxu0
          %v814 = vadd.f32 0.0, %v813
          %v815 = vpop.f32.mrb[0].mxu0
          %816 = vmatprep.mubr.f32.mxu0 0.0
          %817 = vmatmul.mubr.f32.gmra.mrb[0].mxu0 %v692
          %v818 = vpop.f32.mrb[0].mxu0
          %v819 = vadd.f32 0.0, %v818
          %v820 = vpop.f32.mrb[0].mxu0
          %821 = vmatprep.mubr.f32.mxu0 0.0
          %822 = vmatmul.mubr.f32.gmra.mrb[0].mxu0 %v693
          %v823 = vpop.f32.mrb[0].mxu0
          %v824 = vadd.f32 0.0, %v823
          %v825 = vpop.f32.mrb[0].mxu0
          %826 = vmatprep.mubr.f32.mxu0 0.0
          %827 = vmatmul.mubr.f32.gmra.mrb[0].mxu0 %v694
          %v828 = vpop.f32.mrb[0].mxu0
          %v829 = vadd.f32 0.0, %v828
          %v830 = vpop.f32.mrb[0].mxu0
          %831 = vmatprep.mubr.f32.mxu0 0.0
          %832 = vmatmul.mubr.f32.gmra.mrb[0].mxu0 %v695
          %v833 = vpop.f32.mrb[0].mxu0
          %v834 = vadd.f32 0.0, %v833
          %v835 = vpop.f32.mrb[0].mxu0
          %836 = vmatprep.mubr.f32.mxu0 0.0
          %837 = vmatmul.mubr.f32.gmra.mrb[0].mxu0 %v696
          %v838 = vpop.f32.mrb[0].mxu0
          %v839 = vadd.f32 0.0, %v838
          %v840 = vpop.f32.mrb[0].mxu0
          %841 = vmatprep.mubr.f32.mxu0 0.0
          %842 = vmatmul.mubr.f32.gmra.mrb[0].mxu0 %v697
          %v843 = vpop.f32.mrb[0].mxu0
          %v844 = vadd.f32 0.0, %v843
          %v845 = vpop.f32.mrb[0].mxu0
          %846 = vmatprep.mubr.f32.mxu0 0.0
          %847 = vmatmul.mubr.f32.gmra.mrb[0].mxu0 %v698
          %v848 = vpop.f32.mrb[0].mxu0
          %v849 = vadd.f32 0.0, %v848
          %v850 = vpop.f32.mrb[0].mxu0
          %851 = vmatprep.mubr.f32.mxu0 0.0
          %852 = vmatmul.mubr.f32.gmra.mrb[0].mxu0 %v699
          %v853 = vpop.f32.mrb[0].mxu0
          %v854 = vadd.f32 0.0, %v853
          %v855 = vpop.f32.mrb[0].mxu0
          %856 = vmatprep.mubr.f32.mxu0 0.0
          %857 = vmatmul.mubr.f32.gmra.mrb[0].mxu0 %v700
          %v858 = vpop.f32.mrb[0].mxu0
          %v859 = vadd.f32 0.0, %v858
          %v860 = vpop.f32.mrb[0].mxu0
          %861 = vdwg.mxu0
          %v862 = vstv %s617
          %v863 = vmul.f32 %v862, %v784
          %v864 = vmul.f32 %v862, %v789
          %v865 = vmul.f32 %v862, %v794
          %v866 = vmul.f32 %v862, %v799
          %v867 = vmul.f32 %v862, %v804
          %v868 = vmul.f32 %v862, %v809
          %v869 = vmul.f32 %v862, %v814
          %v870 = vmul.f32 %v862, %v819
          %v871 = vmul.f32 %v862, %v824
          %v872 = vmul.f32 %v862, %v829
          %v873 = vmul.f32 %v862, %v834
          %v874 = vmul.f32 %v862, %v839
          %v875 = vmul.f32 %v862, %v844
          %v876 = vmul.f32 %v862, %v849
          %v877 = vmul.f32 %v862, %v854
          %v878 = vmul.f32 %v862, %v859
          %s879 = ssub.f32 1.0, %s617
          %v880 = vstv %s879
          %v881 = vmul.f32 %v880, %v685
          %v882 = vmul.f32 %v880, %v686
          %v883 = vmul.f32 %v880, %v687
          %v884 = vmul.f32 %v880, %v688
          %v885 = vmul.f32 %v880, %v689
          %v886 = vmul.f32 %v880, %v690
          %v887 = vmul.f32 %v880, %v691
          %v888 = vmul.f32 %v880, %v692
          %v889 = vmul.f32 %v880, %v693
          %v890 = vmul.f32 %v880, %v694
          %v891 = vmul.f32 %v880, %v695
          %v892 = vmul.f32 %v880, %v696
          %v893 = vmul.f32 %v880, %v697
          %v894 = vmul.f32 %v880, %v698
          %v895 = vmul.f32 %v880, %v699
          %v896 = vmul.f32 %v880, %v700
          %v897 = vadd.f32 %v863, %v881
          %v898 = vadd.f32 %v864, %v882
          %v899 = vadd.f32 %v865, %v883
          %v900 = vadd.f32 %v866, %v884
          %v901 = vadd.f32 %v867, %v885
          %v902 = vadd.f32 %v868, %v886
          %v903 = vadd.f32 %v869, %v887
          %v904 = vadd.f32 %v870, %v888
          %v905 = vadd.f32 %v871, %v889
          %v906 = vadd.f32 %v872, %v890
          %v907 = vadd.f32 %v873, %v891
          %v908 = vadd.f32 %v874, %v892
          %v909 = vadd.f32 %v875, %v893
          %v910 = vadd.f32 %v876, %v894
          %v911 = vadd.f32 %v877, %v895
          %v912 = vadd.f32 %v878, %v896
          %913 = vst [vmem:[%s362] sm:$0xff] %v897
          %914 = vst [vmem:[%s362 + $0x8] sm:$0xff] %v898
          %915 = vst [vmem:[%s362 + $0x10] sm:$0xff] %v899
          %916 = vst [vmem:[%s362 + $0x18] sm:$0xff] %v900
          %917 = vst [vmem:[%s362 + $0x20] sm:$0xff] %v901
          %918 = vst [vmem:[%s362 + $0x28] sm:$0xff] %v902
          %919 = vst [vmem:[%s362 + $0x30] sm:$0xff] %v903
          %920 = vst [vmem:[%s362 + $0x38] sm:$0xff] %v904
          %921 = vst [vmem:[%s362 + $0x40] sm:$0xff] %v905
          %922 = vst [vmem:[%s362 + $0x48] sm:$0xff] %v906
          %923 = vst [vmem:[%s362 + $0x50] sm:$0xff] %v907
          %924 = vst [vmem:[%s362 + $0x58] sm:$0xff] %v908
          %925 = vst [vmem:[%s362 + $0x60] sm:$0xff] %v909
          %926 = vst [vmem:[%s362 + $0x68] sm:$0xff] %v910
          %927 = vst [vmem:[%s362 + $0x70] sm:$0xff] %v911
          %928 = vst [vmem:[%s362 + $0x78] sm:$0xff] %v912
        $region68: #{tpu_custom_call.1} parent=39 // pred_fallthru
          _
        %s929 = sand.u32 %s169, 1
        %s930 = scalar_lea.sflag [#allocation5], %s929
        %s931 = sand.u32 %s169, 1
        %s932 = smul.addr %s931, 128
        %s933 = scalar_lea.vmem [#allocation13], %s932
        // Predicated region
        $region69: #{tpu_custom_call.1} parent=39 // pred_check
          %p934 = pneg %p179
        $region70: #{tpu_custom_call.1} parent=39 // pred_check_branch
          %936 = sbr.rel (%p934) target = $region72
        $region71: #{tpu_custom_call.1} parent=39 // pred_region
          %s937 = smul.u32 16, %s31
          %s939 = ssub.s32 2048, 2048
          %940 = vsyncadd %s930, %s939
          %s941 = smul.addr %s937, 128
          %s942 = scalar_lea.hbm %s5, %s941
          %s943 = sshll.u32 %s933, 4
          %s944 = int_to_ptr.vmem [resolvable:$true] %s943
          %949 = dma.vmem_to_hbm [thread:$0]  %s944, 2048, %s942, %s930, 128, 128, 8
        $region72: #{tpu_custom_call.1} parent=39 // pred_fallthru
          _
      $region40: #{tpu_custom_call.1} parent=5 // pred_fallthru
        _
      %p950 = scmp.le.s32.totalorder 2, %s22
      // Predicated region
      $region73: #{tpu_custom_call.1} parent=5 // pred_check
        %p951 = pneg %p950
      $region74: #{tpu_custom_call.1} parent=5 // pred_check_branch
        %953 = sbr.rel (%p951) target = $region76
      $region75: #{tpu_custom_call.1} parent=5 // pred_region
        %s954 = ssub.s32 %s22, 2
        // Predicated region
        $region77: #{tpu_custom_call.1} parent=75 // pred_check
          %p955 = pneg %p185
        $region78: #{tpu_custom_call.1} parent=75 // pred_check_branch
          %957 = sbr.rel (%p955) target = $region80
        $region79: #{tpu_custom_call.1} parent=75 // pred_region
          %s958 = sand.u32 %s170, 1
          %s959 = scalar_lea.sflag [#allocation5], %s958
          %s960 = sand.u32 %s170, 1
          %s961 = smul.addr %s960, 128
          %s962 = scalar_lea.vmem [#allocation13], %s961
          %963 = dma.done %s959, 2048
        $region80: #{tpu_custom_call.1} parent=75 // pred_fallthru
          _
      $region76: #{tpu_custom_call.1} parent=5 // pred_fallthru
        _
    $region6: #{tpu_custom_call.1} parent=1 // loop_footer
      %s26 = sadd.s32 1, %s22
    $region7: #{tpu_custom_call.1} parent=1 // loop_footer_branch
      %21 = sbr.rel target = $region3
    $region8: #{tpu_custom_call.1} parent=1 // loop_exit
      _
    %964 = vsyncpa [#allocation4], 1
    %s965 = scalar_lea.sflag [#allocation4], 1
    %966 = vsyncpa %s965, 1
    %967 = vsyncpa [#allocation9], 1
    %s968 = scalar_lea.sflag [#allocation9], 1
    %969 = vsyncpa %s968, 1
    %970 = vsyncpa [#allocation12], 1
    %971 = vsyncpa [#allocation5], 1
    %s972 = scalar_lea.sflag [#allocation5], 1
    %973 = vsyncpa %s972, 1
    %974 = vsyncpa [#allocation6], 1
    %s975 = scalar_lea.sflag [#allocation6], 1
    %976 = vsyncpa %s975, 1

</llo_original>
